<compile_context>
chip_gen: v7x
topology: tpu7x:2x2x1
jax: 0.10.0
libtpu: 0.0.40
codegen_flags: <defaults>
</compile_context>

<pallas_src>
import functools

import jax
import jax.numpy as jnp
from jax import lax
from jax.experimental import pallas as pl
from jax.experimental.pallas import tpu as pltpu


def _round_up(x, m):
    return (x + m - 1) // m * m


# ----------------------------- tile selection -----------------------------

def _pick_tiles(mp, np_):
    """mp is a multiple of 8, np_ a multiple of 128.  Prefer >=2 output blocks
    along a 'parallel' grid axis (feeds both TensorCores on v7x); tiles capped
    at 256 (v6e/v7x MXU size; v5e's 128x128 MXUs just take two passes)."""
    if np_ <= 128:
        tn = np_
    elif np_ % 256 == 0:
        tn = min(256, np_ // 2)
    else:
        tn = 128
    tm = mp
    if np_ // tn < 2 and mp >= 16 and mp % 16 == 0:
        tm = mp // 2                       # give the grid a 2nd parallel block
    if tm > 256:
        for cand in range(256, 7, -8):
            if mp % cand == 0:
                tm = cand
                break
    return tm, tn


def _pick_k_tile(kp, pref=1024):
    """K tile for the fallback path where full-K residency exceeds VMEM."""
    if kp <= pref:
        return kp
    for cand in range(pref, 127, -128):
        if kp % cand == 0:
            return cand
    return 128


# ---------------------------- Pallas kernels ----------------------------

def _gemm_kernel(a_ref, b_ref, bias_ref, *rest, apply_relu, has_residual):
    """Single-step GEMM: full-K tiles, fused bias (+residual) (+ReLU)."""
    if has_residual:
        res_ref, o_ref = rest
    else:
        (o_ref,) = rest
    out = jnp.dot(a_ref[...], b_ref[...], preferred_element_type=jnp.float32)
    out = out + bias_ref[...]
    if has_residual:
        out = out + res_ref[...].astype(jnp.float32)
    if apply_relu:
        out = jnp.maximum(out, 0.0)
    o_ref[...] = out.astype(o_ref.dtype)


def _gemm_acc_kernel(a_ref, b_ref, bias_ref, *rest, apply_relu, has_residual):
    """K-tiled fallback with an f32 VMEM accumulator."""
    if has_residual:
        res_ref, o_ref, acc_ref = rest
    else:
        o_ref, acc_ref = rest
    k = pl.program_id(2)

    @pl.when(k == 0)
    def _():
        acc_ref[...] = jnp.zeros_like(acc_ref)

    acc_ref[...] += jnp.dot(a_ref[...], b_ref[...],
                            preferred_element_type=jnp.float32)

    @pl.when(k == pl.num_programs(2) - 1)
    def _():
        out = acc_ref[...] + bias_ref[...]
        if has_residual:
            out = out + res_ref[...].astype(jnp.float32)
        if apply_relu:
            out = jnp.maximum(out, 0.0)
        o_ref[...] = out.astype(o_ref.dtype)


_VMEM_BUDGET = 20 * 1024 * 1024   # collapse K whenever the working set fits


def matmul_bias(a, b_baked, bias_baked, residual=None, *, relu, n_out,
                out_dtype=jnp.bfloat16):
    """(M,K) @ pre-baked (Kp,Np) bf16 weight + f32 bias[1,Np] (+ residual),
    optional fused ReLU.  Only the activations are padded per call; the
    result is sliced back to (M, n_out)."""
    m, k = a.shape
    kp, np_ = b_baked.shape
    mp = _round_up(max(m, 8), 8)
    tm, tn = _pick_tiles(mp, np_)

    a_p = a.astype(jnp.bfloat16)
    if (mp, kp) != (m, k):
        a_p = jnp.pad(a_p, ((0, mp - m), (0, kp - k)))

    inputs = [a_p, b_baked, bias_baked]
    has_res = residual is not None
    if has_res:
        r_p = residual.astype(jnp.bfloat16)
        if r_p.shape != (mp, np_):
            r_p = jnp.pad(r_p, ((0, mp - r_p.shape[0]),
                                (0, np_ - r_p.shape[1])))
        inputs.append(r_p)

    out_bytes = jnp.dtype(out_dtype).itemsize
    cost = pl.CostEstimate(
        flops=2 * mp * np_ * kp,
        transcendentals=0,
        bytes_accessed=(mp * kp * 2 + kp * np_ * 2 + np_ * 4
                        + (mp * np_ * 2 if has_res else 0)
                        + mp * np_ * out_bytes))

    # Double-buffered working set with the whole K dimension resident.
    full_k_bytes = 2 * ((tm * kp + kp * tn) * 2 + tn * 4
                        + tm * tn * (out_bytes + (2 if has_res else 0)))

    if full_k_bytes <= _VMEM_BUDGET:
        # Fast path: single K step -> no accumulator, no init/finalize.
        in_specs = [
            pl.BlockSpec((tm, kp), lambda i, j: (i, 0)),
            pl.BlockSpec((kp, tn), lambda i, j: (0, j)),
            pl.BlockSpec((1, tn), lambda i, j: (0, j)),
        ]
        if has_res:
            in_specs.append(pl.BlockSpec((tm, tn), lambda i, j: (i, j)))
        out = pl.pallas_call(
            functools.partial(_gemm_kernel, apply_relu=relu,
                              has_residual=has_res),
            out_shape=jax.ShapeDtypeStruct((mp, np_), out_dtype),
            grid_spec=pltpu.PrefetchScalarGridSpec(
                num_scalar_prefetch=0,
                grid=(mp // tm, np_ // tn),
                in_specs=in_specs,
                out_specs=pl.BlockSpec((tm, tn), lambda i, j: (i, j))),
            compiler_params=pltpu.CompilerParams(
                dimension_semantics=("parallel", "parallel"),
                vmem_limit_bytes=32 * 1024 * 1024),
            cost_estimate=cost,
        )(*inputs)
    else:
        tk = _pick_k_tile(kp)
        in_specs = [
            pl.BlockSpec((tm, tk), lambda i, j, kk: (i, kk)),
            pl.BlockSpec((tk, tn), lambda i, j, kk: (kk, j)),
            pl.BlockSpec((1, tn), lambda i, j, kk: (0, j)),
        ]
        if has_res:
            in_specs.append(pl.BlockSpec((tm, tn), lambda i, j, kk: (i, j)))
        out = pl.pallas_call(
            functools.partial(_gemm_acc_kernel, apply_relu=relu,
                              has_residual=has_res),
            out_shape=jax.ShapeDtypeStruct((mp, np_), out_dtype),
            grid_spec=pltpu.PrefetchScalarGridSpec(
                num_scalar_prefetch=0,
                grid=(mp // tm, np_ // tn, kp // tk),
                in_specs=in_specs,
                out_specs=pl.BlockSpec((tm, tn), lambda i, j, kk: (i, j)),
                scratch_shapes=[pltpu.VMEM((tm, tn), jnp.float32)]),
            compiler_params=pltpu.CompilerParams(
                dimension_semantics=("parallel", "parallel", "arbitrary"),
                vmem_limit_bytes=32 * 1024 * 1024),
            cost_estimate=cost,
        )(*inputs)

    if (mp, np_) != (m, n_out):
        out = out[:m, :n_out]
    return out


# ------------------------- conv / pooling helpers ------------------------

def im2col(x, kh, kw, stride, pad):
    """x: NHWC -> (N*Ho*Wo, kh*kw*C) patches (tap-major, channel-minor)."""
    n, h, w, c = x.shape
    xp = jnp.pad(x, ((0, 0), (pad, pad), (pad, pad), (0, 0)))
    ho = (h + 2 * pad - kh) // stride + 1
    wo = (w + 2 * pad - kw) // stride + 1
    cols = []
    for i in range(kh):
        for j in range(kw):
            cols.append(xp[:, i:i + stride * ho:stride,
                           j:j + stride * wo:stride, :])
    patches = jnp.stack(cols, axis=3)            # (n, ho, wo, kh*kw, c)
    return patches.reshape(n * ho * wo, kh * kw * c), ho, wo


def conv_bn(x, p, *, stride, pad, relu, residual=None):
    """x NHWC bf16, p a pre-baked conv+folded-BN parameter dict.  Optional
    `residual` (NHWC, conv output shape) is added in the GEMM epilogue."""
    kh, kw, c, o = p["kh"], p["kw"], p["c"], p["o"]
    n, h, w, _ = x.shape
    if kh == 1 and kw == 1 and pad == 0:
        # 1x1 conv: strided subsample, pure GEMM, no im2col.
        xs = x[:, ::stride, ::stride, :]
        ho, wo = xs.shape[1], xs.shape[2]
        patches = xs.reshape(n * ho * wo, c)
        w_mat = p["w"]
    elif kh == 3 and kw == 3 and pad == 1 and h == 1 and w == 1:
        # Center-tap fast path (exact): the single 3x3 window over a padded
        # 1x1 input reads real data only at the centre tap; all other taps
        # multiply zero padding.  Output is 1x1 for any stride.
        ho = wo = 1
        patches = x.reshape(n, c)
        w_mat = p["w_center"]
    else:
        patches, ho, wo = im2col(x, kh, kw, stride, pad)
        w_mat = p["w"]
    res2d = None
    if residual is not None:
        res2d = residual.reshape(n * ho * wo, o)
    out = matmul_bias(patches, w_mat, p["b"], res2d, relu=relu, n_out=o)
    return out.reshape(n, ho, wo, o)


def max_pool_3x3_s2(x):
    # TODO(synk): plain lax.reduce_window (no dedicated Pallas kernel).
    init = jnp.asarray(-jnp.inf, dtype=x.dtype)
    return lax.reduce_window(x, init, lax.max,
                             (1, 3, 3, 1), (1, 2, 2, 1),
                             [(0, 0), (1, 1), (1, 1), (0, 0)])


# ----------------------------- parameters --------------------------------

def fold_bn(w, gamma, beta, mean, var, eps=1e-5):
    scale = gamma / jnp.sqrt(var + eps)
    return w * scale[:, None, None, None], beta - mean * scale


def bake_conv(w, b):
    """Fold a PyTorch-layout conv weight (O,C,kh,kw) + bias into GEMM layout
    once: bf16 (Kp, Np) matrix (tap-major/channel-minor rows, lane-padded
    output cols) and f32 (1, Np) bias.  Also bakes the centre-tap matrix for
    3x3 convs (1x1-spatial fast path)."""
    o, c, kh, kw = w.shape
    k = kh * kw * c
    kp = _round_up(k, 128)
    np_ = max(128, _round_up(o, 128))
    w_mat = jnp.transpose(w, (2, 3, 1, 0)).reshape(k, o)
    entry = {
        "w": jnp.pad(w_mat, ((0, kp - k), (0, np_ - o))).astype(jnp.bfloat16),
        "b": jnp.pad(b.astype(jnp.float32), (0, np_ - o))[None, :],
        "kh": kh, "kw": kw, "c": c, "o": o,
    }
    if kh == 3 and kw == 3:
        ct = (kh // 2) * kw + (kw // 2)
        wc = w_mat[ct * c:(ct + 1) * c, :]
        kcp = _round_up(c, 128)
        entry["w_center"] = jnp.pad(
            wc, ((0, kcp - c), (0, np_ - o))).astype(jnp.bfloat16)
    return entry


def init_params(seed=0):
    # TODO(synk): torchvision pretrained=True weights cannot be loaded here;
    # all parameters are deterministic synthetic values with identical shapes.
    base = jax.random.PRNGKey(seed)
    counter = [0]

    def nk():
        counter[0] += 1
        return jax.random.fold_in(base, counter[0])

    def conv_bn_p(o, c, k):
        fan_in = c * k * k
        w = jax.random.normal(nk(), (o, c, k, k), jnp.float32) * (2.0 / fan_in) ** 0.5
        gamma = 1.0 + 0.1 * jax.random.normal(nk(), (o,), jnp.float32)
        beta = 0.1 * jax.random.normal(nk(), (o,), jnp.float32)
        mean = 0.1 * jax.random.normal(nk(), (o,), jnp.float32)
        var = 1.0 + 0.5 * jax.random.uniform(nk(), (o,), jnp.float32)
        return bake_conv(*fold_bn(w, gamma, beta, mean, var))

    params = {"conv1": conv_bn_p(64, 3, 7)}
    cfg = [(64, 3, 1), (128, 4, 2), (256, 6, 2), (512, 3, 2)]   # ResNet-34
    in_ch = 64
    layers = []
    for out_ch, n_blocks, stride in cfg:
        blocks = []
        for bi in range(n_blocks):
            s = stride if bi == 0 else 1
            blk = {"stride": s,
                   "conv1": conv_bn_p(out_ch, in_ch, 3),
                   "conv2": conv_bn_p(out_ch, out_ch, 3)}
            if s != 1 or in_ch != out_ch:
                blk["downsample"] = conv_bn_p(out_ch, in_ch, 1)
            blocks.append(blk)
            in_ch = out_ch
        layers.append(blocks)
    params["layers"] = layers

    fcw = jax.random.normal(nk(), (28, 512), jnp.float32) * (1.0 / 512.0) ** 0.5
    fcb = 0.01 * jax.random.normal(nk(), (28,), jnp.float32)
    np_ = 128
    params["fc"] = {
        "w": jnp.pad(fcw.T, ((0, 0), (0, np_ - 28))).astype(jnp.bfloat16),
        "b": jnp.pad(fcb.astype(jnp.float32), (0, np_ - 28))[None, :],
    }
    return params


# ------------------------------- forward ---------------------------------

def samplenet_forward(params, x_nchw):
    x = x_nchw[:, :3, ...]                                    # x[:, :3, ...]
    x = jnp.transpose(x, (0, 2, 3, 1)).astype(jnp.bfloat16)   # NCHW -> NHWC bf16
    x = conv_bn(x, params["conv1"], stride=2, pad=3, relu=True)
    x = max_pool_3x3_s2(x)                                    # maxpool 3x3/2
    for blocks in params["layers"]:
        for blk in blocks:
            if "downsample" in blk:
                identity = conv_bn(x, blk["downsample"], stride=blk["stride"],
                                   pad=0, relu=False)
            else:
                identity = x
            out = conv_bn(x, blk["conv1"], stride=blk["stride"], pad=1,
                          relu=True)
            # residual add + ReLU fused into the conv2 GEMM epilogue.
            x = conv_bn(out, blk["conv2"], stride=1, pad=1, relu=True,
                        residual=identity)
    x = jnp.mean(x.astype(jnp.float32), axis=(1, 2))          # global avg pool
    # fc 512 -> 28 (lane-padded to 128, sliced back).
    return matmul_bias(x, params["fc"]["w"], params["fc"]["b"],
                       relu=False, n_out=28, out_dtype=jnp.float32)


if __name__ == "__main__":
    key = jax.random.PRNGKey(0)
    x = jax.random.normal(key, (2, 4, 16, 16), jnp.float32)  # NCHW, 4 channels
    params = init_params(0)
    out = samplenet_forward(params, x)
    out = jax.block_until_ready(out)
    assert out.shape == (2, 28) and out.dtype == jnp.float32
    print("KERNEL_OK")
</pallas_src>

<mosaic_0001>
module attributes {stable_mosaic.version = 11 : i64} {
  func.func @_gemm_kernel(%arg0: i32, %arg1: i32, %arg2: memref<64x256xbf16, #tpu.memory_space<vmem>>, %arg3: memref<256x128xbf16, #tpu.memory_space<vmem>>, %arg4: memref<1x128xf32, #tpu.memory_space<vmem>>, %arg5: memref<64x128xbf16, #tpu.memory_space<vmem>>) attributes {dimension_semantics = [#tpu.dimension_semantics<parallel>, #tpu.dimension_semantics<parallel>], iteration_bounds = array<i64: 2, 1>, scalar_prefetch = 0 : i64, scratch_operands = 0 : i64, tpu.core_type = #tpu.core_type<tc>, window_params = [{transform_indices = @transform_0, window_bounds = array<i64: 64, 256>}, {transform_indices = @transform_1, window_bounds = array<i64: 256, 128>}, {transform_indices = @transform_2, window_bounds = array<i64: 1, 128>}, {transform_indices = @transform_3, window_bounds = array<i64: 64, 128>}]} {
    %c0 = arith.constant 0 : index
    %c0_0 = arith.constant 0 : index
    %0 = vector.load %arg2[%c0, %c0_0] : memref<64x256xbf16, #tpu.memory_space<vmem>>, vector<64x256xbf16>
    %c0_1 = arith.constant 0 : index
    %c0_2 = arith.constant 0 : index
    %1 = vector.load %arg3[%c0_1, %c0_2] : memref<256x128xbf16, #tpu.memory_space<vmem>>, vector<256x128xbf16>
    %cst = arith.constant dense<0.000000e+00> : vector<64x128xf32>
    %2 = tpu.matmul %0, %1, %cst {dimension_numbers = #tpu.dot_dimension_numbers<[1], [0], [0], [1], [0, 0, 1, 1], [], []>} : vector<64x256xbf16>, vector<256x128xbf16>, vector<64x128xf32> -> vector<64x128xf32>
    %c0_3 = arith.constant 0 : index
    %c0_4 = arith.constant 0 : index
    %3 = vector.load %arg4[%c0_3, %c0_4] : memref<1x128xf32, #tpu.memory_space<vmem>>, vector<1x128xf32>
    %4 = vector.broadcast %3 : vector<1x128xf32> to vector<64x128xf32>
    %5 = arith.addf %2, %4 : vector<64x128xf32>
    %cst_5 = arith.constant 0.000000e+00 : f32
    %6 = vector.broadcast %cst_5 : f32 to vector<64x128xf32>
    %7 = arith.maximumf %5, %6 : vector<64x128xf32>
    %8 = arith.truncf %7 : vector<64x128xf32> to vector<64x128xbf16>
    %c0_6 = arith.constant 0 : index
    %c0_7 = arith.constant 0 : index
    %9 = vector.load %arg5[%c0_6, %c0_7] : memref<64x128xbf16, #tpu.memory_space<vmem>>, vector<64x128xbf16>
    tpu.vector_store %arg5[%c0_6, %c0_7], %8 {strides = array<i32>} : memref<64x128xbf16, #tpu.memory_space<vmem>>, vector<64x128xbf16>,
    return
  }
  func.func @transform_0(%arg0: i32, %arg1: i32) -> (i32, i32) {
    %c0_i32 = arith.constant 0 : i32
    %c0_i32_0 = arith.constant 0 : i32
    return %arg0, %c0_i32 : i32, i32
  }
  func.func @transform_1(%arg0: i32, %arg1: i32) -> (i32, i32) {
    %c0_i32 = arith.constant 0 : i32
    %c0_i32_0 = arith.constant 0 : i32
    return %c0_i32, %arg1 : i32, i32
  }
  func.func @transform_2(%arg0: i32, %arg1: i32) -> (i32, i32) {
    %c0_i32 = arith.constant 0 : i32
    %c0_i32_0 = arith.constant 0 : i32
    return %c0_i32, %arg1 : i32, i32
  }
  func.func @transform_3(%arg0: i32, %arg1: i32) -> (i32, i32) {
    %c0_i32 = arith.constant 0 : i32
    return %arg0, %arg1 : i32, i32
  }
}

</mosaic_0001>

<llo_original>
// kernel: tpu_custom_call.1
$region0: #{tpu_custom_call.1}
  #allocation0 [shape = 'u32[]', space=smem, size = 0x4, offset = 0x4, fixed_abs, tag = 'smem constant byte address 0x4 - core index']
  #allocation1 [shape = 'u32[144,128]{1,0:T(1,128)}', space=vmem, size = 0x12000, scoped, tag = 'internal scratch']
  %s0 = inlined_call_operand.hbm [shape: bf16[128,256], index: 0, kind: input, shape index: {}]
  %s1 = inlined_call_operand.hbm [shape: bf16[256,128], index: 1, kind: input, shape index: {}]
  %s2 = inlined_call_operand.vmem [shape: f32[1,128], index: 2, kind: input, shape index: {}]
  %s3 = inlined_call_operand.hbm [shape: bf16[128,128], index: 3, kind: output, shape index: {}]
  %s4 = sld [smem:[#allocation0]]
  $region53: #{tpu_custom_call.1} parent=0
    _
  %s6 = ssub.s32 1, %s4
  %s7 = scalar_select 0, %s6, %s4
  $region1: #{tpu_custom_call.1} parent=0
    #allocation2 [shape = 'u8[65536]{0}', space=vmem, size = 0x10000, scoped, tag = 'input window, operand 0']
    #allocation3 [shape = 's32[2]{0}', space=sflag, size = 0x8, scoped, tag = 'scoped memory for tpu_custom_call.1']
    #allocation4 [shape = 's32[2]{0}', space=sflag, size = 0x8, scoped, tag = 'scoped memory for tpu_custom_call.1']
    #allocation5 [shape = 'u8[65536]{0}', space=vmem, size = 0x10000, scoped, tag = 'input window, operand 1, single buffered']
    #allocation6 [shape = 's32[1]{0}', space=sflag, size = 0x4, scoped, tag = 'scoped memory for tpu_custom_call.1']
    #allocation7 [shape = 'u8[32768]{0}', space=vmem, size = 0x8000, scoped, tag = 'output window, operand 0']
    %8 = vsyncpa [#allocation3], 0
    %s9 = scalar_lea.sflag [#allocation3], 1
    %10 = vsyncpa %s9, 0
    %11 = vsyncpa [#allocation6], 0
    %12 = vsyncpa [#allocation4], 0
    %s13 = scalar_lea.sflag [#allocation4], 1
    %14 = vsyncpa %s13, 0
    loop: start=0, step=1, limit=4
    $region2: #{tpu_custom_call.1} parent=1 // loop_pre_header
      _
    $region3: #{tpu_custom_call.1} parent=1 // loop_header
      %s16 = sphi 0, %s20
      %p17 = scmp.ge.s32.totalorder %s16, 4
      %s23 = sphi 0, %s35
      %s24 = sphi 0, %s31
      %s25 = sphi 0, %s23
      %s26 = sphi 0, %s24
      %s27 = sphi 0, %s25
      %s28 = sphi 0, %s26
      %s38 = sphi 0, %s40
      %s41 = sphi 0, %s38
      %s42 = sphi 0, %s41
      %s58 = sphi 0, %s42
      %s64 = sphi 0, %s66
      %s67 = sphi 0, %s64
      %s68 = sphi 0, %s67
      %s84 = sphi 0, %s68
      %s90 = sphi 0, %s92
      %s93 = sphi 0, %s90
      %s94 = sphi 0, %s93
      %s110 = sphi 0, %s94
      %s118 = sphi 0, %s120
      %s121 = sphi 0, %s118
      %s122 = sphi 0, %s121
      %s138 = sphi 0, %s122
    $region4: #{tpu_custom_call.1} parent=1 // loop_header_branch
      %19 = sbr.rel (%p17) target = $region8
    $region5: #{tpu_custom_call.1} parent=1 // loop_body
      %s21 = ssub.s32 %s16, 1
      %s22 = ssub.s32 %s16, 2
      %s29 = sadd.s32 1, %s24
      %p30 = scmp.ge.s32.totalorder %s29, 1
      %s31 = scalar_select %p30, 0, %s29
      %s32 = sadd.s32 1, %s23
      %s33 = scalar_select %p30, %s32, %s23
      %p34 = scmp.ge.s32.totalorder %s33, 2
      %s35 = scalar_select %p34, 0, %s33
      %s36 = ssub.s32 %s23, %s35
      %p37 = scmp.eq.s32.totalorder %s36, 0
      %s39 = sadd.s32 %s38, 1
      %s40 = scalar_select %p37, %s38, %s39
      %p43 = pneg %p37
      %p44 = scmp.eq.s32.totalorder %s16, 1
      %p45 = por %p43, %p44
      %p46 = scmp.ne.s32.totalorder %s38, %s41
      %p47 = scmp.eq.s32.totalorder %s16, 0
      %p48 = por %p46, %p47
      %p49 = scmp.ne.s32.totalorder %s38, %s41
      %p50 = scmp.eq.s32.totalorder %s21, 1
      %p51 = por %p49, %p50
      %p52 = scmp.ne.s32.totalorder %s41, %s42
      %p53 = scmp.eq.s32.totalorder %s21, 0
      %p54 = por %p52, %p53
      %p55 = scmp.ne.s32.totalorder %s41, %s42
      %p56 = scmp.eq.s32.totalorder %s22, 1
      %p57 = por %p55, %p56
      %p59 = scmp.ne.s32.totalorder %s42, %s58
      %p60 = scmp.eq.s32.totalorder %s22, 0
      %p61 = por %p59, %p60
      %s62 = ssub.s32 %s24, %s31
      %p63 = scmp.eq.s32.totalorder %s62, 0
      %s65 = sadd.s32 %s64, 1
      %s66 = scalar_select %p63, %s64, %s65
      %p69 = pneg %p63
      %p70 = scmp.eq.s32.totalorder %s16, 1
      %p71 = por %p69, %p70
      %p72 = scmp.ne.s32.totalorder %s64, %s67
      %p73 = scmp.eq.s32.totalorder %s16, 0
      %p74 = por %p72, %p73
      %p75 = scmp.ne.s32.totalorder %s64, %s67
      %p76 = scmp.eq.s32.totalorder %s21, 1
      %p77 = por %p75, %p76
      %p78 = scmp.ne.s32.totalorder %s67, %s68
      %p79 = scmp.eq.s32.totalorder %s21, 0
      %p80 = por %p78, %p79
      %p81 = scmp.ne.s32.totalorder %s67, %s68
      %p82 = scmp.eq.s32.totalorder %s22, 1
      %p83 = por %p81, %p82
      %p85 = scmp.ne.s32.totalorder %s68, %s84
      %p86 = scmp.eq.s32.totalorder %s22, 0
      %p87 = por %p85, %p86
      %s88 = ssub.s32 %s24, %s31
      %p89 = scmp.eq.s32.totalorder %s88, 0
      %s91 = sadd.s32 %s90, 1
      %s92 = scalar_select %p89, %s90, %s91
      %p95 = pneg %p89
      %p96 = scmp.eq.s32.totalorder %s16, 1
      %p97 = por %p95, %p96
      %p98 = scmp.ne.s32.totalorder %s90, %s93
      %p99 = scmp.eq.s32.totalorder %s16, 0
      %p100 = por %p98, %p99
      %p101 = scmp.ne.s32.totalorder %s90, %s93
      %p102 = scmp.eq.s32.totalorder %s21, 1
      %p103 = por %p101, %p102
      %p104 = scmp.ne.s32.totalorder %s93, %s94
      %p105 = scmp.eq.s32.totalorder %s21, 0
      %p106 = por %p104, %p105
      %p107 = scmp.ne.s32.totalorder %s93, %s94
      %p108 = scmp.eq.s32.totalorder %s22, 1
      %p109 = por %p107, %p108
      %p111 = scmp.ne.s32.totalorder %s94, %s110
      %p112 = scmp.eq.s32.totalorder %s22, 0
      %p113 = por %p111, %p112
      %s114 = ssub.s32 %s23, %s35
      %s115 = ssub.s32 %s24, %s31
      %s116 = sor.u32 %s114, %s115
      %p117 = scmp.eq.s32.totalorder %s116, 0
      %s119 = sadd.s32 %s118, 1
      %s120 = scalar_select %p117, %s118, %s119
      %p123 = pneg %p117
      %p124 = scmp.eq.s32.totalorder %s16, 1
      %p125 = por %p123, %p124
      %p126 = scmp.ne.s32.totalorder %s118, %s121
      %p127 = scmp.eq.s32.totalorder %s16, 0
      %p128 = por %p126, %p127
      %p129 = scmp.ne.s32.totalorder %s118, %s121
      %p130 = scmp.eq.s32.totalorder %s21, 1
      %p131 = por %p129, %p130
      %p132 = scmp.ne.s32.totalorder %s121, %s122
      %p133 = scmp.eq.s32.totalorder %s21, 0
      %p134 = por %p132, %p133
      %p135 = scmp.ne.s32.totalorder %s121, %s122
      %p136 = scmp.eq.s32.totalorder %s22, 1
      %p137 = por %p135, %p136
      %p139 = scmp.ne.s32.totalorder %s122, %s138
      %p140 = scmp.eq.s32.totalorder %s22, 0
      %p141 = por %p139, %p140
      %p142 = scmp.le.s32.totalorder 1, %s16
      %p143 = scmp.lt.s32.totalorder %s16, 3
      %p144 = pnand %p142, %p143
      %p145 = pneg %p144
      // Predicated region
      $region9: #{tpu_custom_call.1} parent=5 // pred_check
        _
      $region10: #{tpu_custom_call.1} parent=5 // pred_check_branch
        %147 = sbr.rel (%p144) target = $region12
      $region11: #{tpu_custom_call.1} parent=5 // pred_region
        %s148 = ssub.s32 %s16, 1
        // Predicated region
        $region13: #{tpu_custom_call.1} parent=11 // pred_check
          %p149 = pneg %p80
        $region14: #{tpu_custom_call.1} parent=11 // pred_check_branch
          %151 = sbr.rel (%p149) target = $region16
        $region15: #{tpu_custom_call.1} parent=11 // pred_region
          %s153 = ssub.s32 2048, 2048
          %154 = vsyncadd [#allocation6], %s153
          %s155 = smul.addr %s26, 64
          %s156 = scalar_lea.hbm %s1, %s155
          %s157 = sshll.u32 [#allocation5], 4
          %s158 = int_to_ptr.vmem [resolvable:$true] %s157
          %163 = dma.hbm_to_vmem [thread:$0]  %s156, 2048, %s158, [#allocation6], 64, 64, 4
        $region16: #{tpu_custom_call.1} parent=11 // pred_fallthru
          _
        // Predicated region
        $region17: #{tpu_custom_call.1} parent=11 // pred_check
          %p164 = pneg %p106
        $region18: #{tpu_custom_call.1} parent=11 // pred_check_branch
          %166 = sbr.rel (%p164) target = $region20
        $region19: #{tpu_custom_call.1} parent=11 // pred_region
          %p167 = scmp.lt.s32.totalorder %s26, 0
          %s168 = scalar_select %p167, %s26, 0
          %s169 = scalar_lea.vmem %s2, %s168
        $region20: #{tpu_custom_call.1} parent=11 // pred_fallthru
          _
      $region12: #{tpu_custom_call.1} parent=5 // pred_fallthru
        _
      %p170 = scmp.lt.s32.totalorder %s16, 2
      // Predicated region
      $region21: #{tpu_custom_call.1} parent=5 // pred_check
        %p171 = pneg %p170
      $region22: #{tpu_custom_call.1} parent=5 // pred_check_branch
        %173 = sbr.rel (%p171) target = $region24
      $region23: #{tpu_custom_call.1} parent=5 // pred_region
        // Predicated region
        $region25: #{tpu_custom_call.1} parent=23 // pred_check
          %p174 = pneg %p48
        $region26: #{tpu_custom_call.1} parent=23 // pred_check_branch
          %176 = sbr.rel (%p174) target = $region28
        $region27: #{tpu_custom_call.1} parent=23 // pred_region
          %s177 = sand.u32 %s38, 1
          %s178 = scalar_lea.sflag [#allocation3], %s177
          %s179 = sand.u32 %s38, 1
          %s180 = smul.addr %s179, 64
          %s181 = scalar_lea.vmem [#allocation2], %s180
          %s182 = smul.u32 8, %s23
          %s184 = ssub.s32 1024, 1024
          %185 = vsyncadd %s178, %s184
          %s186 = smul.addr %s182, 2
          %s187 = smul.addr %s186, 64
          %s188 = scalar_lea.hbm %s0, %s187
          %s189 = sshll.u32 %s181, 4
          %s190 = int_to_ptr.vmem [resolvable:$true] %s189
          %195 = dma.hbm_to_vmem [thread:$0]  %s188, 1024, %s190, %s178, 128, 128, 8
        $region28: #{tpu_custom_call.1} parent=23 // pred_fallthru
          _
      $region24: #{tpu_custom_call.1} parent=5 // pred_fallthru
        _
      %p196 = scmp.le.s32.totalorder 1, %s16
      %p197 = scmp.lt.s32.totalorder %s16, 3
      %p198 = pnand %p196, %p197
      %p199 = pneg %p198
      // Predicated region
      $region29: #{tpu_custom_call.1} parent=5 // pred_check
        _
      $region30: #{tpu_custom_call.1} parent=5 // pred_check_branch
        %201 = sbr.rel (%p198) target = $region32
      $region31: #{tpu_custom_call.1} parent=5 // pred_region
        %s202 = ssub.s32 %s16, 1
        %s203 = sand.u32 %s41, 1
        %s204 = scalar_lea.sflag [#allocation3], %s203
        %s205 = sand.u32 %s41, 1
        %s206 = smul.addr %s205, 64
        %s207 = scalar_lea.vmem [#allocation2], %s206
        // Predicated region
        $region33: #{tpu_custom_call.1} parent=31 // pred_check
          %p208 = pneg %p54
        $region34: #{tpu_custom_call.1} parent=31 // pred_check_branch
          %210 = sbr.rel (%p208) target = $region36
        $region35: #{tpu_custom_call.1} parent=31 // pred_region
          %211 = dma.done %s204, 1024
        $region36: #{tpu_custom_call.1} parent=31 // pred_fallthru
          _
        // Predicated region
        $region37: #{tpu_custom_call.1} parent=31 // pred_check
          %p212 = pneg %p80
        $region38: #{tpu_custom_call.1} parent=31 // pred_check_branch
          %214 = sbr.rel (%p212) target = $region40
        $region39: #{tpu_custom_call.1} parent=31 // pred_region
          %215 = dma.done [#allocation6], 2048
        $region40: #{tpu_custom_call.1} parent=31 // pred_fallthru
          _
        %s216 = sand.u32 %s41, 1
        %s217 = scalar_lea.sflag [#allocation3], %s216
        %s218 = sand.u32 %s41, 1
        %s219 = smul.addr %s218, 64
        %s220 = scalar_lea.vmem [#allocation2], %s219
        %p221 = pneg %p54
        %p222 = pneg %p51
        %p223 = pneg %p80
        %p224 = pneg %p77
        %p225 = scmp.lt.s32.totalorder %s26, 0
        %s226 = scalar_select %p225, %s26, 0
        %s227 = scalar_lea.vmem %s2, %s226
        %p228 = pneg %p106
        %p229 = pneg %p103
        %p230 = pneg %p134
        %p231 = pneg %p131
        %s232 = sand.u32 %s121, 1
        %s233 = scalar_lea.sflag [#allocation4], %s232
        %s234 = sand.u32 %s121, 1
        %s235 = smul.addr %s234, 32
        %s236 = scalar_lea.vmem [#allocation7], %s235
        %s237 = smul.u32 8, %s25
        %p238 = scmp.lt.s32.totalorder %s26, 0
        %s239 = scalar_select %p238, %s26, 0
        %s240 = scalar_lea.vmem %s2, %s239
        %s241 = smul.u32 8, %s25
        %v243 = vld [vmem:[%s207] sm:$0xff]
        %v244 = vld [vmem:[%s207 + $0x8] sm:$0xff]
        %v245 = vld [vmem:[%s207 + $0x10] sm:$0xff]
        %v246 = vld [vmem:[%s207 + $0x18] sm:$0xff]
        %v247 = vld [vmem:[%s207 + $0x20] sm:$0xff]
        %v248 = vld [vmem:[%s207 + $0x28] sm:$0xff]
        %v249 = vld [vmem:[%s207 + $0x30] sm:$0xff]
        %v250 = vld [vmem:[%s207 + $0x38] sm:$0xff]
        %v251 = vld [vmem:[#allocation5] sm:$0xf]
        %v252 = vld [vmem:[#allocation5 + $0x4] sm:$0xf]
        %v253 = vld [vmem:[#allocation5 + $0x8] sm:$0xf]
        %v254 = vld [vmem:[#allocation5 + $0xc] sm:$0xf]
        %v255 = vld [vmem:[#allocation5 + $0x10] sm:$0xf]
        %v256 = vld [vmem:[#allocation5 + $0x14] sm:$0xf]
        %v257 = vld [vmem:[#allocation5 + $0x18] sm:$0xf]
        %v258 = vld [vmem:[#allocation5 + $0x1c] sm:$0xf]
        %v259 = vld [vmem:[#allocation5 + $0x20] sm:$0xf]
        %v260 = vld [vmem:[#allocation5 + $0x24] sm:$0xf]
        %v261 = vld [vmem:[#allocation5 + $0x28] sm:$0xf]
        %v262 = vld [vmem:[#allocation5 + $0x2c] sm:$0xf]
        %v263 = vld [vmem:[#allocation5 + $0x30] sm:$0xf]
        %v264 = vld [vmem:[#allocation5 + $0x34] sm:$0xf]
        %v265 = vld [vmem:[#allocation5 + $0x38] sm:$0xf]
        %v266 = vld [vmem:[#allocation5 + $0x3c] sm:$0xf]
        %v267 = vld [vmem:[#allocation5 + $0x40] sm:$0xf]
        %v268 = vld [vmem:[#allocation5 + $0x44] sm:$0xf]
        %v269 = vld [vmem:[#allocation5 + $0x48] sm:$0xf]
        %v270 = vld [vmem:[#allocation5 + $0x4c] sm:$0xf]
        %v271 = vld [vmem:[#allocation5 + $0x50] sm:$0xf]
        %v272 = vld [vmem:[#allocation5 + $0x54] sm:$0xf]
        %v273 = vld [vmem:[#allocation5 + $0x58] sm:$0xf]
        %v274 = vld [vmem:[#allocation5 + $0x5c] sm:$0xf]
        %v275 = vld [vmem:[#allocation5 + $0x60] sm:$0xf]
        %v276 = vld [vmem:[#allocation5 + $0x64] sm:$0xf]
        %v277 = vld [vmem:[#allocation5 + $0x68] sm:$0xf]
        %v278 = vld [vmem:[#allocation5 + $0x6c] sm:$0xf]
        %v279 = vld [vmem:[#allocation5 + $0x70] sm:$0xf]
        %v280 = vld [vmem:[#allocation5 + $0x74] sm:$0xf]
        %v281 = vld [vmem:[#allocation5 + $0x78] sm:$0xf]
        %v282 = vld [vmem:[#allocation5 + $0x7c] sm:$0xf]
        %v283 = vld [vmem:[%s240] sm:$0x1]
        %v285 = vlaneseq
        %v286 = vshrl.u32 %v285, 7
        %v287 = vsub.s32 0, %v286
        %v288 = vrot.slane %v283, %v287
        %v298 = vunpack.c.l.b16 %v243
        %v299 = vunpack.c.h.b16 %v243
        %v300 = vunpack.c.l.b16 %v244
        %v301 = vunpack.c.h.b16 %v244
        %v302 = vunpack.c.l.b16 %v245
        %v303 = vunpack.c.h.b16 %v245
        %v304 = vunpack.c.l.b16 %v246
        %v305 = vunpack.c.h.b16 %v246
        %v306 = vunpack.c.l.b16 %v247
        %v307 = vunpack.c.h.b16 %v247
        %v308 = vunpack.c.l.b16 %v248
        %v309 = vunpack.c.h.b16 %v248
        %v310 = vunpack.c.l.b16 %v249
        %v311 = vunpack.c.h.b16 %v249
        %v312 = vunpack.c.l.b16 %v250
        %v313 = vunpack.c.h.b16 %v250
        %v314 = vpack.c.b16 %v300, %v298
        %v315 = vpack.c.b16 %v301, %v299
        %v316 = vpack.c.b16 %v304, %v302
        %v317 = vpack.c.b16 %v305, %v303
        %v318 = vpack.c.b16 %v308, %v306
        %v319 = vpack.c.b16 %v309, %v307
        %v320 = vpack.c.b16 %v312, %v310
        %v321 = vpack.c.b16 %v313, %v311
        %v362 = vunpack.c.l.b16 %v251
        %v363 = vunpack.c.l.b16 %v252
        %v364 = vunpack.c.l.b16 %v253
        %v365 = vunpack.c.l.b16 %v254
        %v366 = vunpack.c.l.b16 %v255
        %v367 = vunpack.c.l.b16 %v256
        %v368 = vunpack.c.l.b16 %v257
        %v369 = vunpack.c.l.b16 %v258
        %v370 = vunpack.c.l.b16 %v259
        %v371 = vunpack.c.l.b16 %v260
        %v372 = vunpack.c.l.b16 %v261
        %v373 = vunpack.c.l.b16 %v262
        %v374 = vunpack.c.l.b16 %v263
        %v375 = vunpack.c.l.b16 %v264
        %v376 = vunpack.c.l.b16 %v265
        %v377 = vunpack.c.l.b16 %v266
        %v378 = vunpack.c.l.b16 %v267
        %v379 = vunpack.c.l.b16 %v268
        %v380 = vunpack.c.l.b16 %v269
        %v381 = vunpack.c.l.b16 %v270
        %v382 = vunpack.c.l.b16 %v271
        %v383 = vunpack.c.l.b16 %v272
        %v384 = vunpack.c.l.b16 %v273
        %v385 = vunpack.c.l.b16 %v274
        %v386 = vunpack.c.l.b16 %v275
        %v387 = vunpack.c.l.b16 %v276
        %v388 = vunpack.c.l.b16 %v277
        %v389 = vunpack.c.l.b16 %v278
        %v390 = vunpack.c.l.b16 %v279
        %v391 = vunpack.c.l.b16 %v280
        %v392 = vunpack.c.l.b16 %v281
        %v393 = vunpack.c.l.b16 %v282
        %v394 = vpack.c.b16 %v363, %v362
        %v395 = vpack.c.b16 %v365, %v364
        %v396 = vpack.c.b16 %v367, %v366
        %v397 = vpack.c.b16 %v369, %v368
        %v398 = vpack.c.b16 %v371, %v370
        %v399 = vpack.c.b16 %v373, %v372
        %v400 = vpack.c.b16 %v375, %v374
        %v401 = vpack.c.b16 %v377, %v376
        %v402 = vpack.c.b16 %v379, %v378
        %v403 = vpack.c.b16 %v381, %v380
        %v404 = vpack.c.b16 %v383, %v382
        %v405 = vpack.c.b16 %v385, %v384
        %v406 = vpack.c.b16 %v387, %v386
        %v407 = vpack.c.b16 %v389, %v388
        %v408 = vpack.c.b16 %v391, %v390
        %v409 = vpack.c.b16 %v393, %v392
        %426 = vmatprep.subr.bf16.mxu0 0
        %427 = vmatpush1.bf16.msra.mxu0 %v394
        %428 = vmatprep.subr.bf16.mxu0 0
        %429 = vmatpush1.bf16.msra.mxu0 %v395
        %430 = vmatprep.subr.bf16.mxu0 0
        %431 = vmatpush1.bf16.msra.mxu0 %v396
        %432 = vmatprep.subr.bf16.mxu0 0
        %433 = vmatpush1.bf16.msra.mxu0 %v397
        %434 = vmatprep.subr.bf16.mxu0 0
        %435 = vmatpush1.bf16.msra.mxu0 %v398
        %436 = vmatprep.subr.bf16.mxu0 0
        %437 = vmatpush1.bf16.msra.mxu0 %v399
        %438 = vmatprep.subr.bf16.mxu0 0
        %439 = vmatpush1.bf16.msra.mxu0 %v400
        %440 = vmatprep.subr.bf16.mxu0 0
        %441 = vmatpush1.bf16.msra.mxu0 %v401
        %442 = vmatprep.subr.bf16.mxu0 0
        %443 = vmatpush1.bf16.msra.mxu0 %v402
        %444 = vmatprep.subr.bf16.mxu0 0
        %445 = vmatpush1.bf16.msra.mxu0 %v403
        %446 = vmatprep.subr.bf16.mxu0 0
        %447 = vmatpush1.bf16.msra.mxu0 %v404
        %448 = vmatprep.subr.bf16.mxu0 0
        %449 = vmatpush1.bf16.msra.mxu0 %v405
        %450 = vmatprep.subr.bf16.mxu0 0
        %451 = vmatpush1.bf16.msra.mxu0 %v406
        %452 = vmatprep.subr.bf16.mxu0 0
        %453 = vmatpush1.bf16.msra.mxu0 %v407
        %454 = vmatprep.subr.bf16.mxu0 0
        %455 = vmatpush1.bf16.msra.mxu0 %v408
        %456 = vmatprep.subr.bf16.mxu0 0
        %457 = vmatpush1.bf16.msra.mxu0 %v409
        %458 = vmatprep.mubr.bf16.mxu0 %v315
        %459 = vmatmul.mubr.bf16.gmra.mrb[0].mxu0 %v314
        %v460 = vpop.f32.mrb[0].mxu0
        %v461 = vadd.f32 %v288, %v460
        %v462 = vpop.f32.mrb[0].mxu0
        %v463 = vpop.f32.mrb[0].mxu0
        %v464 = vadd.f32 %v288, %v463
        %v465 = vpop.f32.mrb[0].mxu0
        %466 = vmatprep.mubr.bf16.mxu0 %v317
        %467 = vmatmul.mubr.bf16.gmra.mrb[0].mxu0 %v316
        %v468 = vpop.f32.mrb[0].mxu0
        %v469 = vadd.f32 %v288, %v468
        %v470 = vpop.f32.mrb[0].mxu0
        %v471 = vpop.f32.mrb[0].mxu0
        %v472 = vadd.f32 %v288, %v471
        %v473 = vpop.f32.mrb[0].mxu0
        %474 = vmatprep.mubr.bf16.mxu0 %v319
        %475 = vmatmul.mubr.bf16.gmra.mrb[0].mxu0 %v318
        %v476 = vpop.f32.mrb[0].mxu0
        %v477 = vadd.f32 %v288, %v476
        %v478 = vpop.f32.mrb[0].mxu0
        %v479 = vpop.f32.mrb[0].mxu0
        %v480 = vadd.f32 %v288, %v479
        %v481 = vpop.f32.mrb[0].mxu0
        %482 = vmatprep.mubr.bf16.mxu0 %v321
        %483 = vmatmul.mubr.bf16.gmra.mrb[0].mxu0 %v320
        %v484 = vpop.f32.mrb[0].mxu0
        %v485 = vadd.f32 %v288, %v484
        %v486 = vpop.f32.mrb[0].mxu0
        %v487 = vpop.f32.mrb[0].mxu0
        %v488 = vadd.f32 %v288, %v487
        %v489 = vpop.f32.mrb[0].mxu0
        %490 = vdwg.mxu0
        %v491 = vmax.f32 %v461, 0.0
        %v492 = vmax.f32 %v464, 0.0
        %v493 = vmax.f32 %v469, 0.0
        %v494 = vmax.f32 %v472, 0.0
        %v495 = vmax.f32 %v477, 0.0
        %v496 = vmax.f32 %v480, 0.0
        %v497 = vmax.f32 %v485, 0.0
        %v498 = vmax.f32 %v488, 0.0
        %v499 = vpack.c.bf16 %v492, %v491
        %v500 = vpack.c.bf16 %v494, %v493
        %v501 = vpack.c.bf16 %v496, %v495
        %v502 = vpack.c.bf16 %v498, %v497
        %v507 = vunpack.c.l.b16 %v499
        %v508 = vunpack.c.h.b16 %v499
        %v509 = vunpack.c.l.b16 %v500
        %v510 = vunpack.c.h.b16 %v500
        %v511 = vunpack.c.l.b16 %v501
        %v512 = vunpack.c.h.b16 %v501
        %v513 = vunpack.c.l.b16 %v502
        %v514 = vunpack.c.h.b16 %v502
        %v515 = vpack.c.b16 %v507, %v507
        %v516 = vpack.c.b16 %v508, %v508
        %v517 = vpack.c.b16 %v509, %v509
        %v518 = vpack.c.b16 %v510, %v510
        %v519 = vpack.c.b16 %v511, %v511
        %v520 = vpack.c.b16 %v512, %v512
        %v521 = vpack.c.b16 %v513, %v513
        %v522 = vpack.c.b16 %v514, %v514
        %531 = vst [vmem:[%s236] sm:$0xf] %v515
        %532 = vst [vmem:[%s236 + $0x4] sm:$0xf] %v516
        %533 = vst [vmem:[%s236 + $0x8] sm:$0xf] %v517
        %534 = vst [vmem:[%s236 + $0xc] sm:$0xf] %v518
        %535 = vst [vmem:[%s236 + $0x10] sm:$0xf] %v519
        %536 = vst [vmem:[%s236 + $0x14] sm:$0xf] %v520
        %537 = vst [vmem:[%s236 + $0x18] sm:$0xf] %v521
        %538 = vst [vmem:[%s236 + $0x1c] sm:$0xf] %v522
        %s539 = sand.u32 %s121, 1
        %s540 = scalar_lea.sflag [#allocation4], %s539
        %s541 = sand.u32 %s121, 1
        %s542 = smul.addr %s541, 32
        %s543 = scalar_lea.vmem [#allocation7], %s542
        // Predicated region
        $region41: #{tpu_custom_call.1} parent=31 // pred_check
          %p544 = pneg %p131
        $region42: #{tpu_custom_call.1} parent=31 // pred_check_branch
          %546 = sbr.rel (%p544) target = $region44
        $region43: #{tpu_custom_call.1} parent=31 // pred_region
          %s547 = smul.u32 8, %s25
          %s549 = ssub.s32 512, 512
          %550 = vsyncadd %s540, %s549
          %s551 = sadd.s32 %s26, %s547
          %s552 = smul.addr %s551, 64
          %s553 = scalar_lea.hbm %s3, %s552
          %s554 = sshll.u32 %s543, 4
          %s555 = int_to_ptr.vmem [resolvable:$true] %s554
          %560 = dma.vmem_to_hbm [thread:$0]  %s555, 512, %s553, %s540, 64, 64, 4
        $region44: #{tpu_custom_call.1} parent=31 // pred_fallthru
          _
      $region32: #{tpu_custom_call.1} parent=5 // pred_fallthru
        _
      %p561 = scmp.le.s32.totalorder 2, %s16
      // Predicated region
      $region45: #{tpu_custom_call.1} parent=5 // pred_check
        %p562 = pneg %p561
      $region46: #{tpu_custom_call.1} parent=5 // pred_check_branch
        %564 = sbr.rel (%p562) target = $region48
      $region47: #{tpu_custom_call.1} parent=5 // pred_region
        %s565 = ssub.s32 %s16, 2
        // Predicated region
        $region49: #{tpu_custom_call.1} parent=47 // pred_check
          %p566 = pneg %p137
        $region50: #{tpu_custom_call.1} parent=47 // pred_check_branch
          %568 = sbr.rel (%p566) target = $region52
        $region51: #{tpu_custom_call.1} parent=47 // pred_region
          %s569 = sand.u32 %s122, 1
          %s570 = scalar_lea.sflag [#allocation4], %s569
          %s571 = sand.u32 %s122, 1
          %s572 = smul.addr %s571, 32
          %s573 = scalar_lea.vmem [#allocation7], %s572
          %574 = dma.done %s570, 512
        $region52: #{tpu_custom_call.1} parent=47 // pred_fallthru
          _
      $region48: #{tpu_custom_call.1} parent=5 // pred_fallthru
        _
    $region6: #{tpu_custom_call.1} parent=1 // loop_footer
      %s20 = sadd.s32 1, %s16
    $region7: #{tpu_custom_call.1} parent=1 // loop_footer_branch
      %15 = sbr.rel target = $region3
    $region8: #{tpu_custom_call.1} parent=1 // loop_exit
      _
    %575 = vsyncpa [#allocation3], 1
    %s576 = scalar_lea.sflag [#allocation3], 1
    %577 = vsyncpa %s576, 1
    %578 = vsyncpa [#allocation6], 1
    %579 = vsyncpa [#allocation4], 1
    %s580 = scalar_lea.sflag [#allocation4], 1
    %581 = vsyncpa %s580, 1

</llo_original>
